<compile_context>
chip_gen: v7x
topology: tpu7x:2x2x1
jax: 0.10.0
libtpu: 0.0.40
codegen_flags: <defaults>
</compile_context>

<pallas_src>
import functools

import jax
import jax.numpy as jnp
from jax import lax
from jax.experimental import pallas as pl
from jax.experimental.pallas import tpu as pltpu

EPS = 1e-5  # torch.nn.GroupNorm default eps


# ---------------------------------------------------------------------------
# Generation-aware tiling / VMEM configuration
# ---------------------------------------------------------------------------
def _tpu_config():
    """Return (preferred MXU N-tile width, vmem_limit_bytes) for this chip.

    v4/v5 MXUs are 128 wide in N -> prefer 128-wide Cout tiles; v6e/v7x are
    256 wide.  v7x has only 64 MiB VMEM per TensorCore -> keep the scoped
    limit at 48 MiB there; 128-MiB parts (v4/v5e/v6e) get 100 MiB.
    """
    lane_pref = 256
    vmem_limit = 48 * 1024 * 1024          # safe on every generation (< v7x 64 MiB)
    try:
        kind = jax.devices()[0].device_kind.lower()
        if ("v4" in kind) or ("v5" in kind):
            lane_pref = 128
        if ("v4" in kind) or ("v5" in kind) or ("v6" in kind):
            vmem_limit = 100 * 1024 * 1024  # 128 MiB physical VMEM parts
    except Exception:
        pass
    return lane_pref, vmem_limit


def _cout_tile(cout, lane_pref=256):
    cands = (256, 128, 64) if lane_pref >= 256 else (128, 64)
    for tc in cands:
        if cout % tc == 0:
            return tc
    # TODO(synk): pad/mask the last Cout tile (e.g. Cout=320/640) instead of a
    # single wide masked-store tile.
    return cout


# ---------------------------------------------------------------------------
# In-kernel SiLU (divide on the EUP via approximate reciprocal)
# ---------------------------------------------------------------------------
def _silu(x):
    return x * pl.reciprocal(1.0 + jnp.exp(-x), approx=True)


# ---------------------------------------------------------------------------
# Kernel 1: per-(batch, channel) sum / sum-of-squares (row-tiled, accumulated)
# ---------------------------------------------------------------------------
def _stats_kernel(x_ref, o_ref):
    @pl.when(pl.program_id(1) == 0)
    def _():
        o_ref[...] = jnp.zeros_like(o_ref)

    xv = x_ref[0].astype(jnp.float32)                      # (TH, W, C)
    s = jnp.sum(xv, axis=(0, 1), keepdims=True)            # (1, 1, C)
    ss = jnp.sum(xv * xv, axis=(0, 1), keepdims=True)      # (1, 1, C)
    o_ref[...] += jnp.concatenate([s, ss], axis=1)         # (1, 2, C)


def channel_stats(x, *, budget_bytes=8 * 1024 * 1024):
    """Per-(batch, channel) sum and sum of squares -> (N, 2, C) f32.

    TODO(synk): in a full UNet, fuse these stats into the epilogue of whatever
    produced x (as done for GN2 via the conv stats epilogue below).
    """
    N, H, W, C = x.shape
    itemsize = jnp.dtype(x.dtype).itemsize
    TH = 1
    for th in range(H, 0, -1):                # largest divisor of H that fits VMEM
        if H % th == 0 and th * W * C * itemsize <= budget_bytes:
            TH = th
            break
    return pl.pallas_call(
        _stats_kernel,
        out_shape=jax.ShapeDtypeStruct((N, 2, C), jnp.float32),
        grid_spec=pltpu.PrefetchScalarGridSpec(
            num_scalar_prefetch=0,
            grid=(N, H // TH),
            in_specs=[pl.BlockSpec((1, TH, W, C), lambda n, j: (n, j, 0, 0))],
            out_specs=pl.BlockSpec((1, 2, C), lambda n, j: (n, 0, 0))),
        compiler_params=pltpu.CompilerParams(
            dimension_semantics=("parallel", "arbitrary")),
    )(x)


# ---------------------------------------------------------------------------
# Tiny JAX glue: (sum, sumsq) group stats -> per-channel affine (scale, shift),
# optionally folding the per-channel time bias torch adds before the second GN.
# ---------------------------------------------------------------------------
def _gn_affine(sum_c, ssq_c, gamma, beta, groups, hw, t=None):
    # NOTE: var = E[x^2] - E[x]^2 in f32 can lose precision when |mean| >> std;
    # clamped below.  TODO(synk): switch to a shifted / Welford accumulation.
    n, c = sum_c.shape
    cpg = c // groups
    sum_c = sum_c.astype(jnp.float32)
    ssq_c = ssq_c.astype(jnp.float32)
    if t is not None:
        t = t.astype(jnp.float32)
        ssq_c = ssq_c + 2.0 * t * sum_c + hw * t * t
        sum_c = sum_c + hw * t
    gs = sum_c.reshape(n, groups, cpg).sum(-1)
    gss = ssq_c.reshape(n, groups, cpg).sum(-1)
    cnt = float(hw * cpg)
    mean = gs / cnt
    var = jnp.maximum(gss / cnt - mean * mean, 0.0)
    rstd = lax.rsqrt(var + EPS)
    mean_c = jnp.repeat(mean, cpg, axis=1)          # (N, C)
    rstd_c = jnp.repeat(rstd, cpg, axis=1)          # (N, C)
    scale = rstd_c * gamma[None, :]
    if t is None:
        shift = beta[None, :] - mean_c * scale
    else:
        shift = (t - mean_c) * scale + beta[None, :]
    return scale, shift


# ---------------------------------------------------------------------------
# Kernels 2-4: fused  normalize -> SiLU -> 3x3 conv  (+ stats / + residual)
# ---------------------------------------------------------------------------
def _stage_taps(a3_ref, x, scale, shift, H, W, Cin):
    """Normalize + SiLU (bf16 output), pack the three dx taps along the lane
    (K) dim:  a3[y+1, x, dx*Cin + c] = silu(x*scale+shift)[y, x+dx-1, c]
    (zero outside the image); rows 0 and H+1 are the zero dy-halo rows."""
    a = _silu(x.astype(jnp.float32) * scale + shift).astype(jnp.bfloat16)  # (H,W,Cin)
    zcol = jnp.zeros((H, 1, Cin), jnp.bfloat16)
    left = jnp.concatenate([zcol, a[:, :W - 1, :]], axis=1)   # value at x = a[x-1]
    right = jnp.concatenate([a[:, 1:, :], zcol], axis=1)      # value at x = a[x+1]
    if Cin % 128 == 0:
        # Lane-aligned slabs: store directly, no (H, W, 3*Cin) concat temp.
        a3_ref[1:H + 1, :, 0:Cin] = left
        a3_ref[1:H + 1, :, Cin:2 * Cin] = a
        a3_ref[1:H + 1, :, 2 * Cin:3 * Cin] = right
    else:
        a3_ref[1:H + 1, :, :] = jnp.concatenate([left, a, right], axis=-1)
    zrow = jnp.zeros((1, W, 3 * Cin), jnp.bfloat16)
    a3_ref[0:1, :, :] = zrow
    a3_ref[H + 1:H + 2, :, :] = zrow


def _conv_taps_acc(acc_ref, a3_ref, w3_ref, H, W, Cin):
    """3 wide-K MXU matmuls (K = 3*Cin) accumulated into an f32 VMEM scratch."""
    for dy in range(3):
        slab = a3_ref[dy:dy + H, :, :].reshape(H * W, 3 * Cin)   # bf16 free view
        p = jnp.dot(slab, w3_ref[dy], preferred_element_type=jnp.float32)
        if dy == 0:
            acc_ref[...] = p
        else:
            acc_ref[...] += p


def _gn_conv_kernel(x_ref, sc_ref, sh_ref, w3_ref, b_ref, o_ref, st_ref,
                    a3_ref, acc_ref, *, H, W, Cin, TC):
    @pl.when(pl.program_id(1) == 0)
    def _():
        _stage_taps(a3_ref, x_ref[0], sc_ref[...], sh_ref[...], H, W, Cin)

    _conv_taps_acc(acc_ref, a3_ref, w3_ref, H, W, Cin)
    f = acc_ref[...] + b_ref[...]
    o_ref[...] = f.reshape(1, H, W, TC).astype(o_ref.dtype)
    # Fused epilogue: per-channel stats of the conv output for the next GN.
    s = jnp.sum(f, axis=0, keepdims=True)
    ss = jnp.sum(f * f, axis=0, keepdims=True)
    st_ref[...] = jnp.concatenate([s, ss], axis=0)[None]


def _gn_conv_res_id_kernel(x_ref, sc_ref, sh_ref, w3_ref, b_ref, r_ref, o_ref,
                           a3_ref, acc_ref, *, H, W, Cin, TC):
    @pl.when(pl.program_id(1) == 0)
    def _():
        _stage_taps(a3_ref, x_ref[0], sc_ref[...], sh_ref[...], H, W, Cin)

    _conv_taps_acc(acc_ref, a3_ref, w3_ref, H, W, Cin)
    out = (acc_ref[...] + b_ref[...]).reshape(1, H, W, TC)
    o_ref[...] = (out + r_ref[...].astype(jnp.float32)).astype(o_ref.dtype)


def _gn_conv_res_proj_kernel(x_ref, sc_ref, sh_ref, w3_ref, b_ref, r_ref,
                             wr_ref, br_ref, o_ref, a3_ref, acc_ref,
                             *, H, W, Cin, Cr, TC):
    @pl.when(pl.program_id(1) == 0)
    def _():
        _stage_taps(a3_ref, x_ref[0], sc_ref[...], sh_ref[...], H, W, Cin)

    _conv_taps_acc(acc_ref, a3_ref, w3_ref, H, W, Cin)
    res = r_ref[0].reshape(H * W, Cr)                        # bf16 (pre-cast)
    acc_ref[...] += jnp.dot(res, wr_ref[...], preferred_element_type=jnp.float32)
    out = acc_ref[...] + b_ref[...] + br_ref[...]
    o_ref[...] = out.reshape(1, H, W, TC).astype(o_ref.dtype)


def gn_silu_conv(x, scale, shift, w3, b, *, residual=None, res_w=None,
                 res_b=None, with_stats=False, out_dtype=None,
                 lane_pref=256, vmem_limit=48 * 1024 * 1024):
    """Fused (GroupNorm-affine -> SiLU -> 3x3 conv [-> + residual]) on NHWC.

    x:      (N, H, W, Cin) bf16   pre-norm activation
    scale:  (N, Cin) f32          per-channel scale (gamma * rstd)
    shift:  (N, Cin) f32          per-channel shift (incl. folded time bias)
    w3:     (3, 3*Cin, Cout) bf16 conv weights with dx packed into K
    b:      (1, Cout) f32         conv bias
    residual / res_w / res_b:     optional skip (identity if res_w is None)
    with_stats: also return per-channel (sum, sumsq) of the output (N,2,Cout).
    """
    N, H, W, Cin = x.shape
    assert W % 8 == 0, "W must be a multiple of 8 (free (H,W,C)->(H*W,C) views)"
    Cout = w3.shape[-1]
    TC = _cout_tile(Cout, lane_pref)
    nco = Cout // TC
    out_dtype = x.dtype if out_dtype is None else out_dtype
    scale3 = scale.reshape(N, 1, Cin).astype(jnp.float32)
    shift3 = shift.reshape(N, 1, Cin).astype(jnp.float32)

    # x is only consumed at co == 0 (the a3 scratch supersedes it afterwards).
    # TODO(synk): single-buffer it / stage via manual DMA to drop its second
    # pipeline buffer on v7x; and add row-halo H tiling for very large H.
    base_specs = [
        pl.BlockSpec((1, H, W, Cin), lambda n, co: (n, 0, 0, 0)),
        pl.BlockSpec((1, 1, Cin), lambda n, co: (n, 0, 0)),
        pl.BlockSpec((1, 1, Cin), lambda n, co: (n, 0, 0)),
        pl.BlockSpec((3, 3 * Cin, TC), lambda n, co: (0, 0, co)),
        pl.BlockSpec((1, TC), lambda n, co: (0, co)),
    ]
    out_spec = pl.BlockSpec((1, H, W, TC), lambda n, co: (n, 0, 0, co))
    scratch = [pltpu.VMEM((H + 2, W, 3 * Cin), jnp.bfloat16),   # dx-packed taps
               pltpu.VMEM((H * W, TC), jnp.float32)]            # conv accumulator
    cparams = pltpu.CompilerParams(
        dimension_semantics=("parallel", "arbitrary"),
        vmem_limit_bytes=vmem_limit)

    if with_stats:
        kern = functools.partial(_gn_conv_kernel, H=H, W=W, Cin=Cin, TC=TC)
        return pl.pallas_call(
            kern,
            out_shape=(jax.ShapeDtypeStruct((N, H, W, Cout), out_dtype),
                       jax.ShapeDtypeStruct((N, 2, Cout), jnp.float32)),
            grid_spec=pltpu.PrefetchScalarGridSpec(
                num_scalar_prefetch=0,
                grid=(N, nco),
                in_specs=base_specs,
                out_specs=(out_spec,
                           pl.BlockSpec((1, 2, TC), lambda n, co: (n, 0, co))),
                scratch_shapes=scratch),
            compiler_params=cparams,
        )(x, scale3, shift3, w3, b)

    if res_w is None:
        assert residual is not None and residual.shape[-1] == Cout
        kern = functools.partial(_gn_conv_res_id_kernel, H=H, W=W, Cin=Cin, TC=TC)
        in_specs = base_specs + [
            pl.BlockSpec((1, H, W, TC), lambda n, co: (n, 0, 0, co)),
        ]
        args = (x, scale3, shift3, w3, b, residual)
    else:
        Cr = residual.shape[-1]
        kern = functools.partial(_gn_conv_res_proj_kernel, H=H, W=W, Cin=Cin,
                                 Cr=Cr, TC=TC)
        in_specs = base_specs + [
            pl.BlockSpec((1, H, W, Cr), lambda n, co: (n, 0, 0, 0)),
            pl.BlockSpec((Cr, TC), lambda n, co: (0, co)),
            pl.BlockSpec((1, TC), lambda n, co: (0, co)),
        ]
        args = (x, scale3, shift3, w3, b, residual, res_w, res_b)

    return pl.pallas_call(
        kern,
        out_shape=jax.ShapeDtypeStruct((N, H, W, Cout), out_dtype),
        grid_spec=pltpu.PrefetchScalarGridSpec(
            num_scalar_prefetch=0,
            grid=(N, nco),
            in_specs=in_specs,
            out_specs=out_spec,
            scratch_shapes=scratch),
        compiler_params=cparams,
    )(*args)


# ---------------------------------------------------------------------------
# Full forward pass
# ---------------------------------------------------------------------------
def unet_residual_block_nhwc(x_nhwc, time, params, *, norm_groups=32):
    """NHWC-native forward (bf16 HBM activations, f32 stats/accumulation)."""
    lane_pref, vmem_limit = _tpu_config()
    x = x_nhwc.astype(jnp.bfloat16)                                     # bf16 HBM
    N, H, W, Cin = x.shape
    w1 = params["conv_feature_w"]                                       # (3,3,Cin,Cout)
    Cout = w1.shape[-1]
    hw = H * W

    # Pre-pack conv weights (dx folded into K), MXU operands in bf16.
    w3_1 = w1.reshape(3, 3 * Cin, Cout).astype(jnp.bfloat16)
    b1 = params["conv_feature_b"].reshape(1, Cout).astype(jnp.float32)
    w3_2 = params["conv_merged_w"].reshape(3, 3 * Cout, Cout).astype(jnp.bfloat16)
    b2 = params["conv_merged_b"].reshape(1, Cout).astype(jnp.float32)

    # GroupNorm 1: stats kernel -> per-channel affine.
    st1 = channel_stats(x)                                              # (N, 2, Cin)
    scale1, shift1 = _gn_affine(st1[:, 0], st1[:, 1], params["gn1_gamma"],
                                params["gn1_beta"], norm_groups, hw)

    # Fused GN1 + SiLU + conv_feature; bf16 intermediate + fused output stats.
    f, st2 = gn_silu_conv(x, scale1, shift1, w3_1, b1, with_stats=True,
                          out_dtype=jnp.bfloat16,
                          lane_pref=lane_pref, vmem_limit=vmem_limit)

    # Time path in plain XLA (tiny matmul, not worth a kernel).
    t = (jax.nn.silu(time.astype(jnp.float32)) @ params["linear_time_w"]
         + params["linear_time_b"])                                     # (N, Cout)

    # GroupNorm 2 with the time bias folded analytically into the group stats.
    scale2, shift2 = _gn_affine(st2[:, 0], st2[:, 1], params["gn2_gamma"],
                                params["gn2_beta"], norm_groups, hw, t=t)

    res_w = params.get("res_w")
    if res_w is None:
        out = gn_silu_conv(f, scale2, shift2, w3_2, b2, residual=x,
                           out_dtype=jnp.float32,
                           lane_pref=lane_pref, vmem_limit=vmem_limit)
    else:
        out = gn_silu_conv(
            f, scale2, shift2, w3_2, b2, residual=x,
            res_w=res_w.astype(jnp.bfloat16),
            res_b=params["res_b"].reshape(1, Cout).astype(jnp.float32),
            out_dtype=jnp.float32,
            lane_pref=lane_pref, vmem_limit=vmem_limit)
    return out


def unet_residual_block(feature_nchw, time, params, *, norm_groups=32):
    """PyTorch-parity entry point (NCHW in / NCHW out).

    TODO(synk): keep the whole UNet NHWC end-to-end and drop these relayout
    transposes (each is a full HBM pass in XLA)."""
    x = jnp.transpose(feature_nchw, (0, 2, 3, 1))                       # NHWC
    out = unet_residual_block_nhwc(x, time, params, norm_groups=norm_groups)
    return jnp.transpose(out, (0, 3, 1, 2))                             # NCHW


# ---------------------------------------------------------------------------
# Pure-JAX reference (f32, torch semantics) for correctness check
# ---------------------------------------------------------------------------
def _groupnorm_ref(x, gamma, beta, G):
    N, H, W, C = x.shape
    xg = x.reshape(N, H, W, G, C // G)
    mean = xg.mean(axis=(1, 2, 4), keepdims=True)
    var = ((xg - mean) ** 2).mean(axis=(1, 2, 4), keepdims=True)
    y = ((xg - mean) / jnp.sqrt(var + EPS)).reshape(N, H, W, C)
    return y * gamma.reshape(1, 1, 1, C) + beta.reshape(1, 1, 1, C)


def _conv3_ref(x, w, b):
    y = lax.conv_general_dilated(x, w, (1, 1), ((1, 1), (1, 1)),
                                 dimension_numbers=("NHWC", "HWIO", "NHWC"))
    return y + b.reshape(1, 1, 1, -1)


def _ref_forward(feature_nchw, time, params, norm_groups=32):
    x = jnp.transpose(feature_nchw, (0, 2, 3, 1)).astype(jnp.float32)
    h = jax.nn.silu(_groupnorm_ref(x, params["gn1_gamma"], params["gn1_beta"],
                                   norm_groups))
    f = _conv3_ref(h, params["conv_feature_w"], params["conv_feature_b"])
    t = jax.nn.silu(time) @ params["linear_time_w"] + params["linear_time_b"]
    m = f + t.reshape(t.shape[0], 1, 1, -1)
    m = jax.nn.silu(_groupnorm_ref(m, params["gn2_gamma"], params["gn2_beta"],
                                   norm_groups))
    out = _conv3_ref(m, params["conv_merged_w"], params["conv_merged_b"])
    if params.get("res_w") is None:
        res = x
    else:
        res = x @ params["res_w"] + params["res_b"].reshape(1, 1, 1, -1)
    return jnp.transpose(out + res, (0, 3, 1, 2))


# ---------------------------------------------------------------------------
if __name__ == "__main__":
    N, H, W = 2, 16, 16
    n_time, G = 128, 32
    key = jax.random.PRNGKey(0)

    def make_params(k, cin, cout, s=0.1):
        ks = jax.random.split(k, 12)
        nrm = lambda kk, shp: (s * jax.random.normal(kk, shp)).astype(jnp.float32)
        p = {
            "gn1_gamma": 1.0 + nrm(ks[0], (cin,)),
            "gn1_beta": nrm(ks[1], (cin,)),
            "conv_feature_w": nrm(ks[2], (3, 3, cin, cout)),   # HWIO
            "conv_feature_b": nrm(ks[3], (cout,)),
            "linear_time_w": nrm(ks[4], (n_time, cout)),
            "linear_time_b": nrm(ks[5], (cout,)),
            "gn2_gamma": 1.0 + nrm(ks[6], (cout,)),
            "gn2_beta": nrm(ks[7], (cout,)),
            "conv_merged_w": nrm(ks[8], (3, 3, cout, cout)),
            "conv_merged_b": nrm(ks[9], (cout,)),
        }
        if cin != cout:  # nn.Identity() skip when cin == cout
            p["res_w"] = nrm(ks[10], (cin, cout))
            p["res_b"] = nrm(ks[11], (cout,))
        return p

    for (cin, cout) in ((32, 64), (64, 64)):   # projected skip / identity skip
        params = make_params(jax.random.fold_in(key, 1000 * cin + cout), cin, cout)
        feature = jax.random.normal(jax.random.PRNGKey(1), (N, cin, H, W),
                                    jnp.float32)
        time = jax.random.normal(jax.random.PRNGKey(2), (N, n_time), jnp.float32)

        out = unet_residual_block(feature, time, params, norm_groups=G)
        out = jax.block_until_ready(out)

        ref = _ref_forward(feature, time, params, norm_groups=G)
        err_max = float(jnp.max(jnp.abs(out - ref)))
        err_mean = float(jnp.mean(jnp.abs(out - ref)))
        assert out.shape == (N, cout, H, W), out.shape
        # bf16 activations / bf16 MXU operands vs. f32 torch reference.
        assert err_max < 1.5e-1, f"cin={cin} cout={cout} max abs err {err_max}"
        assert err_mean < 1e-2, f"cin={cin} cout={cout} mean abs err {err_mean}"

    print("KERNEL_OK")
</pallas_src>

<mosaic_0001>
module attributes {stable_mosaic.version = 11 : i64} {
  func.func @_stats_kernel(%arg0: i32, %arg1: i32, %arg2: memref<1x16x16x32xbf16, #tpu.memory_space<vmem>>, %arg3: memref<1x2x32xf32, #tpu.memory_space<vmem>>) attributes {dimension_semantics = [#tpu.dimension_semantics<parallel>, #tpu.dimension_semantics<arbitrary>], iteration_bounds = array<i64: 2, 1>, scalar_prefetch = 0 : i64, scratch_operands = 0 : i64, tpu.core_type = #tpu.core_type<tc>, window_params = [{transform_indices = @transform_0, window_bounds = array<i64: 1, 16, 16, 32>}, {transform_indices = @transform_1, window_bounds = array<i64: 1, 2, 32>}]} {
    %c0_i32 = arith.constant 0 : i32
    %0 = arith.cmpi eq, %arg1, %c0_i32 : i32
    %1 = arith.extui %0 : i1 to i32
    %c0_i32_0 = arith.constant 0 : i32
    %2 = arith.cmpi ne, %1, %c0_i32_0 : i32
    scf.if %2 {
      %cst_11 = arith.constant 0.000000e+00 : f32
      %15 = vector.broadcast %cst_11 : f32 to vector<1x2x32xf32>
      %c0_12 = arith.constant 0 : index
      %c0_13 = arith.constant 0 : index
      %c0_14 = arith.constant 0 : index
      %16 = vector.load %arg3[%c0_12, %c0_13, %c0_14] : memref<1x2x32xf32, #tpu.memory_space<vmem>>, vector<1x2x32xf32>
      tpu.vector_store %arg3[%c0_12, %c0_13, %c0_14], %15 {strides = array<i32>} : memref<1x2x32xf32, #tpu.memory_space<vmem>>, vector<1x2x32xf32>,
    } else {
    }
    %c0 = arith.constant 0 : index
    %c0_1 = arith.constant 0 : index
    %c0_2 = arith.constant 0 : index
    %c0_3 = arith.constant 0 : index
    %3 = vector.load %arg2[%c0, %c0_1, %c0_2, %c0_3] : memref<1x16x16x32xbf16, #tpu.memory_space<vmem>>, vector<1x16x16x32xbf16>
    %4 = vector.shape_cast %3 : vector<1x16x16x32xbf16> to vector<16x16x32xbf16>
    %5 = arith.extf %4 : vector<16x16x32xbf16> to vector<16x16x32xf32>
    %cst = arith.constant dense<0.000000e+00> : vector<32xf32>
    %6 = vector.multi_reduction <add>, %5, %cst [0, 1] : vector<16x16x32xf32> to vector<32xf32>
    %7 = vector.shape_cast %6 : vector<32xf32> to vector<1x1x32xf32>
    %8 = arith.mulf %5, %5 : vector<16x16x32xf32>
    %cst_4 = arith.constant dense<0.000000e+00> : vector<32xf32>
    %9 = vector.multi_reduction <add>, %8, %cst_4 [0, 1] : vector<16x16x32xf32> to vector<32xf32>
    %10 = vector.shape_cast %9 : vector<32xf32> to vector<1x1x32xf32>
    %c0_5 = arith.constant 0 : index
    %c0_6 = arith.constant 0 : index
    %c0_7 = arith.constant 0 : index
    %11 = vector.load %arg3[%c0_5, %c0_6, %c0_7] : memref<1x2x32xf32, #tpu.memory_space<vmem>>, vector<1x2x32xf32>
    %12 = tpu.concatenate %7, %10 in 1 : vector<1x1x32xf32>, vector<1x1x32xf32> -> vector<1x2x32xf32>
    %13 = arith.addf %11, %12 : vector<1x2x32xf32>
    %c0_8 = arith.constant 0 : index
    %c0_9 = arith.constant 0 : index
    %c0_10 = arith.constant 0 : index
    %14 = vector.load %arg3[%c0_8, %c0_9, %c0_10] : memref<1x2x32xf32, #tpu.memory_space<vmem>>, vector<1x2x32xf32>
    tpu.vector_store %arg3[%c0_8, %c0_9, %c0_10], %13 {strides = array<i32>} : memref<1x2x32xf32, #tpu.memory_space<vmem>>, vector<1x2x32xf32>,
    return
  }
  func.func @transform_0(%arg0: i32, %arg1: i32) -> (i32, i32, i32, i32) {
    %c0_i32 = arith.constant 0 : i32
    %c0_i32_0 = arith.constant 0 : i32
    %c0_i32_1 = arith.constant 0 : i32
    return %arg0, %arg1, %c0_i32, %c0_i32_0 : i32, i32, i32, i32
  }
  func.func @transform_1(%arg0: i32, %arg1: i32) -> (i32, i32, i32) {
    %c0_i32 = arith.constant 0 : i32
    %c0_i32_0 = arith.constant 0 : i32
    %c0_i32_1 = arith.constant 0 : i32
    return %arg0, %c0_i32, %c0_i32_0 : i32, i32, i32
  }
}

</mosaic_0001>

<llo_original>
// kernel: tpu_custom_call.1
$region0: #{tpu_custom_call.1}
  #allocation0 [shape = 'u32[]', space=smem, size = 0x4, offset = 0x4, fixed_abs, tag = 'smem constant byte address 0x4 - core index']
  #allocation1 [shape = 'u32[144,128]{1,0:T(1,128)}', space=vmem, size = 0x12000, scoped, tag = 'internal scratch']
  %s0 = inlined_call_operand.hbm [shape: bf16[2,16,16,32], index: 0, kind: input, shape index: {}]
  %s1 = inlined_call_operand.hbm [shape: f32[2,2,32], index: 1, kind: output, shape index: {}]
  %s2 = sld [smem:[#allocation0]]
  $region45: #{tpu_custom_call.1} parent=0
    _
  %s4 = ssub.s32 1, %s2
  %s5 = scalar_select 0, %s4, %s2
  $region1: #{tpu_custom_call.1} parent=0
    #allocation2 [shape = 'u8[131072]{0}', space=vmem, size = 0x20000, scoped, tag = 'input window, operand 0']
    #allocation3 [shape = 's32[2]{0}', space=sflag, size = 0x8, scoped, tag = 'scoped memory for tpu_custom_call.1']
    #allocation4 [shape = 's32[2]{0}', space=sflag, size = 0x8, scoped, tag = 'scoped memory for tpu_custom_call.1']
    #allocation5 [shape = 'u8[2048]{0}', space=vmem, size = 0x800, scoped, tag = 'output window, operand 0']
    %6 = vsyncpa [#allocation3], 0
    %s7 = scalar_lea.sflag [#allocation3], 1
    %8 = vsyncpa %s7, 0
    %9 = vsyncpa [#allocation4], 0
    %s10 = scalar_lea.sflag [#allocation4], 1
    %11 = vsyncpa %s10, 0
    loop: start=0, step=1, limit=4
    $region2: #{tpu_custom_call.1} parent=1 // loop_pre_header
      _
    $region3: #{tpu_custom_call.1} parent=1 // loop_header
      %s13 = sphi 0, %s17
      %p14 = scmp.ge.s32.totalorder %s13, 4
      %s20 = sphi 0, %s32
      %s21 = sphi 0, %s28
      %s22 = sphi 0, %s20
      %s23 = sphi 0, %s21
      %s24 = sphi 0, %s22
      %s25 = sphi 0, %s23
      %s37 = sphi 0, %s39
      %s40 = sphi 0, %s37
      %s41 = sphi 0, %s40
      %s57 = sphi 0, %s41
      %s63 = sphi 0, %s65
      %s66 = sphi 0, %s63
      %s67 = sphi 0, %s66
      %s83 = sphi 0, %s67
    $region4: #{tpu_custom_call.1} parent=1 // loop_header_branch
      %16 = sbr.rel (%p14) target = $region8
    $region5: #{tpu_custom_call.1} parent=1 // loop_body
      %s18 = ssub.s32 %s13, 1
      %s19 = ssub.s32 %s13, 2
      %s26 = sadd.s32 1, %s21
      %p27 = scmp.ge.s32.totalorder %s26, 1
      %s28 = scalar_select %p27, 0, %s26
      %s29 = sadd.s32 1, %s20
      %s30 = scalar_select %p27, %s29, %s20
      %p31 = scmp.ge.s32.totalorder %s30, 2
      %s32 = scalar_select %p31, 0, %s30
      %s33 = ssub.s32 %s20, %s32
      %s34 = ssub.s32 %s21, %s28
      %s35 = sor.u32 %s33, %s34
      %p36 = scmp.eq.s32.totalorder %s35, 0
      %s38 = sadd.s32 %s37, 1
      %s39 = scalar_select %p36, %s37, %s38
      %p42 = pneg %p36
      %p43 = scmp.eq.s32.totalorder %s13, 1
      %p44 = por %p42, %p43
      %p45 = scmp.ne.s32.totalorder %s37, %s40
      %p46 = scmp.eq.s32.totalorder %s13, 0
      %p47 = por %p45, %p46
      %p48 = scmp.ne.s32.totalorder %s37, %s40
      %p49 = scmp.eq.s32.totalorder %s18, 1
      %p50 = por %p48, %p49
      %p51 = scmp.ne.s32.totalorder %s40, %s41
      %p52 = scmp.eq.s32.totalorder %s18, 0
      %p53 = por %p51, %p52
      %p54 = scmp.ne.s32.totalorder %s40, %s41
      %p55 = scmp.eq.s32.totalorder %s19, 1
      %p56 = por %p54, %p55
      %p58 = scmp.ne.s32.totalorder %s41, %s57
      %p59 = scmp.eq.s32.totalorder %s19, 0
      %p60 = por %p58, %p59
      %s61 = ssub.s32 %s20, %s32
      %p62 = scmp.eq.s32.totalorder %s61, 0
      %s64 = sadd.s32 %s63, 1
      %s65 = scalar_select %p62, %s63, %s64
      %p68 = pneg %p62
      %p69 = scmp.eq.s32.totalorder %s13, 1
      %p70 = por %p68, %p69
      %p71 = scmp.ne.s32.totalorder %s63, %s66
      %p72 = scmp.eq.s32.totalorder %s13, 0
      %p73 = por %p71, %p72
      %p74 = scmp.ne.s32.totalorder %s63, %s66
      %p75 = scmp.eq.s32.totalorder %s18, 1
      %p76 = por %p74, %p75
      %p77 = scmp.ne.s32.totalorder %s66, %s67
      %p78 = scmp.eq.s32.totalorder %s18, 0
      %p79 = por %p77, %p78
      %p80 = scmp.ne.s32.totalorder %s66, %s67
      %p81 = scmp.eq.s32.totalorder %s19, 1
      %p82 = por %p80, %p81
      %p84 = scmp.ne.s32.totalorder %s67, %s83
      %p85 = scmp.eq.s32.totalorder %s19, 0
      %p86 = por %p84, %p85
      %p87 = scmp.le.s32.totalorder 1, %s13
      %p88 = scmp.lt.s32.totalorder %s13, 3
      %p89 = pnand %p87, %p88
      %p90 = pneg %p89
      // Predicated region
      $region9: #{tpu_custom_call.1} parent=5 // pred_check
        _
      $region10: #{tpu_custom_call.1} parent=5 // pred_check_branch
        %92 = sbr.rel (%p89) target = $region12
      $region11: #{tpu_custom_call.1} parent=5 // pred_region
        %s93 = ssub.s32 %s13, 1
      $region12: #{tpu_custom_call.1} parent=5 // pred_fallthru
        _
      %p94 = scmp.lt.s32.totalorder %s13, 2
      // Predicated region
      $region13: #{tpu_custom_call.1} parent=5 // pred_check
        %p95 = pneg %p94
      $region14: #{tpu_custom_call.1} parent=5 // pred_check_branch
        %97 = sbr.rel (%p95) target = $region16
      $region15: #{tpu_custom_call.1} parent=5 // pred_region
        // Predicated region
        $region17: #{tpu_custom_call.1} parent=15 // pred_check
          %p98 = pneg %p47
        $region18: #{tpu_custom_call.1} parent=15 // pred_check_branch
          %100 = sbr.rel (%p98) target = $region20
        $region19: #{tpu_custom_call.1} parent=15 // pred_region
          %s101 = sand.u32 %s37, 1
          %s102 = scalar_lea.sflag [#allocation3], %s101
          %s103 = sand.u32 %s37, 1
          %s104 = smul.addr %s103, 128
          %s105 = scalar_lea.vmem [#allocation2], %s104
          %s106 = smul.u32 16, %s21
          %s108 = ssub.s32 2048, 2048
          %109 = vsyncadd %s102, %s108
          %s110 = smul.addr %s106, 2
          %s111 = smul.addr %s20, 32
          %s112 = sadd.s32 %s110, %s111
          %s113 = smul.addr %s112, 64
          %s114 = scalar_lea.hbm %s0, %s113
          %s115 = sshll.u32 %s105, 4
          %s116 = int_to_ptr.vmem [resolvable:$true] %s115
          %121 = dma.hbm_to_vmem [thread:$0]  %s114, 2048, %s116, %s102, 64, 64, 4
        $region20: #{tpu_custom_call.1} parent=15 // pred_fallthru
          _
      $region16: #{tpu_custom_call.1} parent=5 // pred_fallthru
        _
      %p122 = scmp.le.s32.totalorder 1, %s13
      %p123 = scmp.lt.s32.totalorder %s13, 3
      %p124 = pnand %p122, %p123
      %p125 = pneg %p124
      // Predicated region
      $region21: #{tpu_custom_call.1} parent=5 // pred_check
        _
      $region22: #{tpu_custom_call.1} parent=5 // pred_check_branch
        %127 = sbr.rel (%p124) target = $region24
      $region23: #{tpu_custom_call.1} parent=5 // pred_region
        %s128 = ssub.s32 %s13, 1
        %s129 = sand.u32 %s40, 1
        %s130 = scalar_lea.sflag [#allocation3], %s129
        %s131 = sand.u32 %s40, 1
        %s132 = smul.addr %s131, 128
        %s133 = scalar_lea.vmem [#allocation2], %s132
        // Predicated region
        $region25: #{tpu_custom_call.1} parent=23 // pred_check
          %p134 = pneg %p53
        $region26: #{tpu_custom_call.1} parent=23 // pred_check_branch
          %136 = sbr.rel (%p134) target = $region28
        $region27: #{tpu_custom_call.1} parent=23 // pred_region
          %137 = dma.done %s130, 2048
        $region28: #{tpu_custom_call.1} parent=23 // pred_fallthru
          _
        %s138 = sand.u32 %s40, 1
        %s139 = scalar_lea.sflag [#allocation3], %s138
        %s140 = sand.u32 %s40, 1
        %s141 = smul.addr %s140, 128
        %s142 = scalar_lea.vmem [#allocation2], %s141
        %p143 = pneg %p53
        %p144 = pneg %p50
        %p145 = pneg %p79
        %p146 = pneg %p76
        %s147 = sand.u32 %s66, 1
        %s148 = scalar_lea.sflag [#allocation4], %s147
        %s149 = sand.u32 %s66, 1
        %s150 = smul.addr %s149, 2
        %s151 = scalar_lea.vmem [#allocation5], %s150
        %s152 = smul.u32 16, %s23
        %p153 = scmp.eq.s32.totalorder %s23, 0
        // Predicated region
        $region29: #{tpu_custom_call.1} parent=23 // pred_check
          %p154 = pneg %p153
        $region30: #{tpu_custom_call.1} parent=23 // pred_check_branch
          %156 = sbr.rel (%p154) target = $region32
        $region31: #{tpu_custom_call.1} parent=23 // pred_region
          %vm157 = vcmask 254976
          %158 = vst.msk [vmem:[%s151] sm:$0x3] %vm157, 0.0
        $region32: #{tpu_custom_call.1} parent=23 // pred_fallthru
          _
        %v159 = vld [vmem:[%s133] sm:$0xf]
        %v160 = vld [vmem:[%s133 + $0x4] sm:$0xf]
        %v161 = vld [vmem:[%s133 + $0x8] sm:$0xf]
        %v162 = vld [vmem:[%s133 + $0xc] sm:$0xf]
        %v163 = vld [vmem:[%s133 + $0x10] sm:$0xf]
        %v164 = vld [vmem:[%s133 + $0x14] sm:$0xf]
        %v165 = vld [vmem:[%s133 + $0x18] sm:$0xf]
        %v166 = vld [vmem:[%s133 + $0x1c] sm:$0xf]
        %v167 = vld [vmem:[%s133 + $0x20] sm:$0xf]
        %v168 = vld [vmem:[%s133 + $0x24] sm:$0xf]
        %v169 = vld [vmem:[%s133 + $0x28] sm:$0xf]
        %v170 = vld [vmem:[%s133 + $0x2c] sm:$0xf]
        %v171 = vld [vmem:[%s133 + $0x30] sm:$0xf]
        %v172 = vld [vmem:[%s133 + $0x34] sm:$0xf]
        %v173 = vld [vmem:[%s133 + $0x38] sm:$0xf]
        %v174 = vld [vmem:[%s133 + $0x3c] sm:$0xf]
        %v175 = vld [vmem:[%s133 + $0x40] sm:$0xf]
        %v176 = vld [vmem:[%s133 + $0x44] sm:$0xf]
        %v177 = vld [vmem:[%s133 + $0x48] sm:$0xf]
        %v178 = vld [vmem:[%s133 + $0x4c] sm:$0xf]
        %v179 = vld [vmem:[%s133 + $0x50] sm:$0xf]
        %v180 = vld [vmem:[%s133 + $0x54] sm:$0xf]
        %v181 = vld [vmem:[%s133 + $0x58] sm:$0xf]
        %v182 = vld [vmem:[%s133 + $0x5c] sm:$0xf]
        %v183 = vld [vmem:[%s133 + $0x60] sm:$0xf]
        %v184 = vld [vmem:[%s133 + $0x64] sm:$0xf]
        %v185 = vld [vmem:[%s133 + $0x68] sm:$0xf]
        %v186 = vld [vmem:[%s133 + $0x6c] sm:$0xf]
        %v187 = vld [vmem:[%s133 + $0x70] sm:$0xf]
        %v188 = vld [vmem:[%s133 + $0x74] sm:$0xf]
        %v189 = vld [vmem:[%s133 + $0x78] sm:$0xf]
        %v190 = vld [vmem:[%s133 + $0x7c] sm:$0xf]
        %v191 = vunpack.c.l.bf16 %v159
        %v192 = vunpack.c.l.bf16 %v160
        %v193 = vunpack.c.l.bf16 %v161
        %v194 = vunpack.c.l.bf16 %v162
        %v195 = vunpack.c.l.bf16 %v163
        %v196 = vunpack.c.l.bf16 %v164
        %v197 = vunpack.c.l.bf16 %v165
        %v198 = vunpack.c.l.bf16 %v166
        %v199 = vunpack.c.l.bf16 %v167
        %v200 = vunpack.c.l.bf16 %v168
        %v201 = vunpack.c.l.bf16 %v169
        %v202 = vunpack.c.l.bf16 %v170
        %v203 = vunpack.c.l.bf16 %v171
        %v204 = vunpack.c.l.bf16 %v172
        %v205 = vunpack.c.l.bf16 %v173
        %v206 = vunpack.c.l.bf16 %v174
        %v207 = vunpack.c.l.bf16 %v175
        %v208 = vunpack.c.l.bf16 %v176
        %v209 = vunpack.c.l.bf16 %v177
        %v210 = vunpack.c.l.bf16 %v178
        %v211 = vunpack.c.l.bf16 %v179
        %v212 = vunpack.c.l.bf16 %v180
        %v213 = vunpack.c.l.bf16 %v181
        %v214 = vunpack.c.l.bf16 %v182
        %v215 = vunpack.c.l.bf16 %v183
        %v216 = vunpack.c.l.bf16 %v184
        %v217 = vunpack.c.l.bf16 %v185
        %v218 = vunpack.c.l.bf16 %v186
        %v219 = vunpack.c.l.bf16 %v187
        %v220 = vunpack.c.l.bf16 %v188
        %v221 = vunpack.c.l.bf16 %v189
        %v222 = vunpack.c.l.bf16 %v190
        %vm223 = vcmask 261120
        %v224 = vsel %vm223, %v191, 0.0
        %v225 = vsel %vm223, %v192, 0.0
        %v226 = vadd.f32 %v224, %v225
        %v227 = vsel %vm223, %v193, 0.0
        %v228 = vadd.f32 %v226, %v227
        %v229 = vsel %vm223, %v194, 0.0
        %v230 = vadd.f32 %v228, %v229
        %v231 = vsel %vm223, %v195, 0.0
        %v232 = vadd.f32 %v230, %v231
        %v233 = vsel %vm223, %v196, 0.0
        %v234 = vadd.f32 %v232, %v233
        %v235 = vsel %vm223, %v197, 0.0
        %v236 = vadd.f32 %v234, %v235
        %v237 = vsel %vm223, %v198, 0.0
        %v238 = vadd.f32 %v236, %v237
        %v239 = vsel %vm223, %v199, 0.0
        %v240 = vadd.f32 %v238, %v239
        %v241 = vsel %vm223, %v200, 0.0
        %v242 = vadd.f32 %v240, %v241
        %v243 = vsel %vm223, %v201, 0.0
        %v244 = vadd.f32 %v242, %v243
        %v245 = vsel %vm223, %v202, 0.0
        %v246 = vadd.f32 %v244, %v245
        %v247 = vsel %vm223, %v203, 0.0
        %v248 = vadd.f32 %v246, %v247
        %v249 = vsel %vm223, %v204, 0.0
        %v250 = vadd.f32 %v248, %v249
        %v251 = vsel %vm223, %v205, 0.0
        %v252 = vadd.f32 %v250, %v251
        %v253 = vsel %vm223, %v206, 0.0
        %v254 = vadd.f32 %v252, %v253
        %v255 = vsel %vm223, %v207, 0.0
        %v256 = vadd.f32 %v254, %v255
        %v257 = vsel %vm223, %v208, 0.0
        %v258 = vadd.f32 %v256, %v257
        %v259 = vsel %vm223, %v209, 0.0
        %v260 = vadd.f32 %v258, %v259
        %v261 = vsel %vm223, %v210, 0.0
        %v262 = vadd.f32 %v260, %v261
        %v263 = vsel %vm223, %v211, 0.0
        %v264 = vadd.f32 %v262, %v263
        %v265 = vsel %vm223, %v212, 0.0
        %v266 = vadd.f32 %v264, %v265
        %v267 = vsel %vm223, %v213, 0.0
        %v268 = vadd.f32 %v266, %v267
        %v269 = vsel %vm223, %v214, 0.0
        %v270 = vadd.f32 %v268, %v269
        %v271 = vsel %vm223, %v215, 0.0
        %v272 = vadd.f32 %v270, %v271
        %v273 = vsel %vm223, %v216, 0.0
        %v274 = vadd.f32 %v272, %v273
        %v275 = vsel %vm223, %v217, 0.0
        %v276 = vadd.f32 %v274, %v275
        %v277 = vsel %vm223, %v218, 0.0
        %v278 = vadd.f32 %v276, %v277
        %v279 = vsel %vm223, %v219, 0.0
        %v280 = vadd.f32 %v278, %v279
        %v281 = vsel %vm223, %v220, 0.0
        %v282 = vadd.f32 %v280, %v281
        %v283 = vsel %vm223, %v221, 0.0
        %v284 = vadd.f32 %v282, %v283
        %v285 = vsel %vm223, %v222, 0.0
        %v286 = vadd.f32 %v284, %v285
        %v287 = vrot.slane %v286, 4
        %v288 = vadd.f32 %v286, %v287
        %v289 = vrot.slane %v288, 2
        %v290 = vadd.f32 %v288, %v289
        %v291 = vrot.slane %v290, 1
        %v292 = vadd.f32 %v290, %v291
        %v293 = vmul.f32 %v191, %v191
        %v294 = vmul.f32 %v192, %v192
        %v295 = vmul.f32 %v193, %v193
        %v296 = vmul.f32 %v194, %v194
        %v297 = vmul.f32 %v195, %v195
        %v298 = vmul.f32 %v196, %v196
        %v299 = vmul.f32 %v197, %v197
        %v300 = vmul.f32 %v198, %v198
        %v301 = vmul.f32 %v199, %v199
        %v302 = vmul.f32 %v200, %v200
        %v303 = vmul.f32 %v201, %v201
        %v304 = vmul.f32 %v202, %v202
        %v305 = vmul.f32 %v203, %v203
        %v306 = vmul.f32 %v204, %v204
        %v307 = vmul.f32 %v205, %v205
        %v308 = vmul.f32 %v206, %v206
        %v309 = vmul.f32 %v207, %v207
        %v310 = vmul.f32 %v208, %v208
        %v311 = vmul.f32 %v209, %v209
        %v312 = vmul.f32 %v210, %v210
        %v313 = vmul.f32 %v211, %v211
        %v314 = vmul.f32 %v212, %v212
        %v315 = vmul.f32 %v213, %v213
        %v316 = vmul.f32 %v214, %v214
        %v317 = vmul.f32 %v215, %v215
        %v318 = vmul.f32 %v216, %v216
        %v319 = vmul.f32 %v217, %v217
        %v320 = vmul.f32 %v218, %v218
        %v321 = vmul.f32 %v219, %v219
        %v322 = vmul.f32 %v220, %v220
        %v323 = vmul.f32 %v221, %v221
        %v324 = vmul.f32 %v222, %v222
        %v325 = vsel %vm223, %v293, 0.0
        %v326 = vsel %vm223, %v294, 0.0
        %v327 = vadd.f32 %v325, %v326
        %v328 = vsel %vm223, %v295, 0.0
        %v329 = vadd.f32 %v327, %v328
        %v330 = vsel %vm223, %v296, 0.0
        %v331 = vadd.f32 %v329, %v330
        %v332 = vsel %vm223, %v297, 0.0
        %v333 = vadd.f32 %v331, %v332
        %v334 = vsel %vm223, %v298, 0.0
        %v335 = vadd.f32 %v333, %v334
        %v336 = vsel %vm223, %v299, 0.0
        %v337 = vadd.f32 %v335, %v336
        %v338 = vsel %vm223, %v300, 0.0
        %v339 = vadd.f32 %v337, %v338
        %v340 = vsel %vm223, %v301, 0.0
        %v341 = vadd.f32 %v339, %v340
        %v342 = vsel %vm223, %v302, 0.0
        %v343 = vadd.f32 %v341, %v342
        %v344 = vsel %vm223, %v303, 0.0
        %v345 = vadd.f32 %v343, %v344
        %v346 = vsel %vm223, %v304, 0.0
        %v347 = vadd.f32 %v345, %v346
        %v348 = vsel %vm223, %v305, 0.0
        %v349 = vadd.f32 %v347, %v348
        %v350 = vsel %vm223, %v306, 0.0
        %v351 = vadd.f32 %v349, %v350
        %v352 = vsel %vm223, %v307, 0.0
        %v353 = vadd.f32 %v351, %v352
        %v354 = vsel %vm223, %v308, 0.0
        %v355 = vadd.f32 %v353, %v354
        %v356 = vsel %vm223, %v309, 0.0
        %v357 = vadd.f32 %v355, %v356
        %v358 = vsel %vm223, %v310, 0.0
        %v359 = vadd.f32 %v357, %v358
        %v360 = vsel %vm223, %v311, 0.0
        %v361 = vadd.f32 %v359, %v360
        %v362 = vsel %vm223, %v312, 0.0
        %v363 = vadd.f32 %v361, %v362
        %v364 = vsel %vm223, %v313, 0.0
        %v365 = vadd.f32 %v363, %v364
        %v366 = vsel %vm223, %v314, 0.0
        %v367 = vadd.f32 %v365, %v366
        %v368 = vsel %vm223, %v315, 0.0
        %v369 = vadd.f32 %v367, %v368
        %v370 = vsel %vm223, %v316, 0.0
        %v371 = vadd.f32 %v369, %v370
        %v372 = vsel %vm223, %v317, 0.0
        %v373 = vadd.f32 %v371, %v372
        %v374 = vsel %vm223, %v318, 0.0
        %v375 = vadd.f32 %v373, %v374
        %v376 = vsel %vm223, %v319, 0.0
        %v377 = vadd.f32 %v375, %v376
        %v378 = vsel %vm223, %v320, 0.0
        %v379 = vadd.f32 %v377, %v378
        %v380 = vsel %vm223, %v321, 0.0
        %v381 = vadd.f32 %v379, %v380
        %v382 = vsel %vm223, %v322, 0.0
        %v383 = vadd.f32 %v381, %v382
        %v384 = vsel %vm223, %v323, 0.0
        %v385 = vadd.f32 %v383, %v384
        %v386 = vsel %vm223, %v324, 0.0
        %v387 = vadd.f32 %v385, %v386
        %v388 = vrot.slane %v387, 4
        %v389 = vadd.f32 %v387, %v388
        %v390 = vrot.slane %v389, 2
        %v391 = vadd.f32 %v389, %v390
        %v392 = vrot.slane %v391, 1
        %v393 = vadd.f32 %v391, %v392
        %v394 = vld [vmem:[%s151] sm:$0x3]
        %vm395 = vcmask 1040384
        %v396 = vsel %vm395, %v292, %v393
        %v397 = vadd.f32 %v394, %v396
        %vm398 = vcmask 254976
        %399 = vst.msk [vmem:[%s151] sm:$0x3] %vm398, %v397
        %s400 = sand.u32 %s66, 1
        %s401 = scalar_lea.sflag [#allocation4], %s400
        %s402 = sand.u32 %s66, 1
        %s403 = smul.addr %s402, 2
        %s404 = scalar_lea.vmem [#allocation5], %s403
        // Predicated region
        $region33: #{tpu_custom_call.1} parent=23 // pred_check
          %p405 = pneg %p76
        $region34: #{tpu_custom_call.1} parent=23 // pred_check_branch
          %407 = sbr.rel (%p405) target = $region36
        $region35: #{tpu_custom_call.1} parent=23 // pred_region
          %s409 = ssub.s32 32, 32
          %410 = vsyncadd %s401, %s409
          %s411 = smul.addr %s22, 32
          %s412 = scalar_lea.hbm %s1, %s411
          %s414 = sshll.u32 %s404, 4
          %s415 = int_to_ptr.vmem [resolvable:$true] %s414
          %417 = dma.vmem_to_hbm [thread:$0]  %s415, 32, %s412, %s401
        $region36: #{tpu_custom_call.1} parent=23 // pred_fallthru
          _
      $region24: #{tpu_custom_call.1} parent=5 // pred_fallthru
        _
      %p418 = scmp.le.s32.totalorder 2, %s13
      // Predicated region
      $region37: #{tpu_custom_call.1} parent=5 // pred_check
        %p419 = pneg %p418
      $region38: #{tpu_custom_call.1} parent=5 // pred_check_branch
        %421 = sbr.rel (%p419) target = $region40
      $region39: #{tpu_custom_call.1} parent=5 // pred_region
        %s422 = ssub.s32 %s13, 2
        // Predicated region
        $region41: #{tpu_custom_call.1} parent=39 // pred_check
          %p423 = pneg %p82
        $region42: #{tpu_custom_call.1} parent=39 // pred_check_branch
          %425 = sbr.rel (%p423) target = $region44
        $region43: #{tpu_custom_call.1} parent=39 // pred_region
          %s426 = sand.u32 %s67, 1
          %s427 = scalar_lea.sflag [#allocation4], %s426
          %s428 = sand.u32 %s67, 1
          %s429 = smul.addr %s428, 2
          %s430 = scalar_lea.vmem [#allocation5], %s429
          %431 = dma.done %s427, 32
        $region44: #{tpu_custom_call.1} parent=39 // pred_fallthru
          _
      $region40: #{tpu_custom_call.1} parent=5 // pred_fallthru
        _
    $region6: #{tpu_custom_call.1} parent=1 // loop_footer
      %s17 = sadd.s32 1, %s13
    $region7: #{tpu_custom_call.1} parent=1 // loop_footer_branch
      %12 = sbr.rel target = $region3
    $region8: #{tpu_custom_call.1} parent=1 // loop_exit
      _
    %432 = vsyncpa [#allocation3], 1
    %s433 = scalar_lea.sflag [#allocation3], 1
    %434 = vsyncpa %s433, 1
    %435 = vsyncpa [#allocation4], 1
    %s436 = scalar_lea.sflag [#allocation4], 1
    %437 = vsyncpa %s436, 1

</llo_original>
